<compile_context>
chip_gen: v7x
topology: tpu7x:2x2x1
jax: 0.10.0
libtpu: 0.0.40
codegen_flags: <defaults>
</compile_context>

<pallas_src>
import math
import functools

import jax
import jax.numpy as jnp
from jax import lax
from jax.experimental import pallas as pl
from jax.experimental.pallas import tpu as pltpu


# ---------------------------------------------------------------------------
# Shared helpers
# ---------------------------------------------------------------------------

def _vmem_budget_bytes(headroom=8 << 20):
    """Physical VMEM of this chip generation minus headroom (conservative 64MiB)."""
    cap = 64 << 20
    try:
        info = pltpu.get_tpu_info()
        c = getattr(info, "vmem_capacity_bytes", None)
        if c:
            cap = int(c)
    except Exception:
        pass
    return max(int(cap) - headroom, 32 << 20)


def _pick_batch_tile(B, per_batch_bytes, budget_bytes, soft_cap_bytes=8 << 20):
    """Largest divisor of B that (a) keeps >= 2 parallel grid steps when B >= 2
    (so both v7x TensorCores are used), (b) fits the double-buffered VMEM
    budget (in + out, x2 buffers), (c) stays under a soft block-size cap."""
    limit = max(1, B // 2) if B >= 2 else 1
    best = 1
    for t in range(1, limit + 1):
        if B % t:
            continue
        if 4 * t * per_batch_bytes + (2 << 20) > budget_bytes:
            continue
        if t > 1 and t * per_batch_bytes > soft_cap_bytes:
            continue
        best = t
    return best


def _channel_conv(pooled, w_ref, k):
    """k-tap 1-D conv (zero padded) across the channel/sublane axis of a
    (C, 1) f32 vector, via pltpu.roll shift-and-accumulate (XLU, no MXU)."""
    C = pooled.shape[0]
    pad = (k - 1) // 2
    c_idx = lax.broadcasted_iota(jnp.int32, (C, 1), 0)
    conv = jnp.zeros((C, 1), jnp.float32)
    for j in range(k):                               # k is small & static
        rolled = pltpu.roll(pooled, shift=(pad - j) % C, axis=0)
        src = c_idx + (j - pad)
        valid = jnp.logical_and(src >= 0, src < C)
        conv = conv + w_ref[j] * jnp.where(valid, rolled, 0.0)
    return conv


# ---------------------------------------------------------------------------
# Fused single-pass kernel (1 HBM read + 1 HBM write per element)
# ---------------------------------------------------------------------------

def _eca_fused_kernel(w_ref, x_ref, o_ref, *, k, hw_real, b_tile):
    # w_ref: SMEM (k,) conv1d weights (scalar-prefetched)
    # x_ref / o_ref: VMEM (b_tile, C, HW) block, channels on sublanes,
    #                flattened spatial on lanes.
    inv_hw = 1.0 / float(hw_real)
    for b in range(b_tile):                          # b_tile is small & static
        xb = x_ref[b]                                # (C, HW)
        # Global average pool; accumulate in f32 without materializing an
        # f32 copy of the slab.
        pooled = jnp.sum(xb, axis=-1, dtype=jnp.float32, keepdims=True) * inv_hw
        conv = _channel_conv(pooled, w_ref, k)       # (C, 1)
        gate = jax.nn.sigmoid(conv).astype(xb.dtype)
        o_ref[b] = xb * gate                         # broadcast over lanes


# ---------------------------------------------------------------------------
# Two-pass fallback (spatially tiled) for slabs that do not fit VMEM
# ---------------------------------------------------------------------------

def _eca_pool_gate_kernel(w_ref, x_ref, gate_ref, *, k, hw_real, sp_tile):
    # grid = (B, n_sp); x_ref: (C, sp_tile); gate_ref: (C, 1) f32 accumulator
    # that stays resident across the spatial (reduction) grid axis.
    s = pl.program_id(1)

    @pl.when(s == 0)
    def _init():
        gate_ref[...] = jnp.zeros_like(gate_ref)

    x = x_ref[...]
    # Mask the (possibly) partial last spatial tile: out-of-bounds lanes hold
    # unspecified data and must not contribute to the sum.
    col = lax.broadcasted_iota(jnp.int32, x.shape, 1) + s * sp_tile
    x = jnp.where(col < hw_real, x, jnp.zeros_like(x))
    gate_ref[...] += jnp.sum(x, axis=-1, dtype=jnp.float32, keepdims=True)

    @pl.when(s == pl.num_programs(1) - 1)
    def _finalize():
        pooled = gate_ref[...] * (1.0 / float(hw_real))
        conv = _channel_conv(pooled, w_ref, k)
        gate_ref[...] = jax.nn.sigmoid(conv)


def _eca_apply_kernel(x_ref, gate_ref, o_ref):
    # x_ref / o_ref: (C, sp_tile); gate_ref: (C, 1) f32.  Out-of-bounds lanes
    # of a partial last tile are simply never written back to HBM.
    o_ref[...] = x_ref[...] * gate_ref[...].astype(o_ref.dtype)


# ---------------------------------------------------------------------------
# Wrapper
# ---------------------------------------------------------------------------

def eca_forward(x, w, kernel_size, *, force_two_pass=False, spatial_tile=None):
    """x: (B, C, H, W); w: (kernel_size,) float32 conv1d weights."""
    B, C, H, W = x.shape
    HW = H * W
    isz = x.dtype.itemsize
    per_batch_bytes = C * HW * isz
    slack = 2 << 20

    budget = _vmem_budget_bytes()
    x_flat = x.reshape(B, C, HW)          # free (contiguous) reshape, no pad
    w = jnp.asarray(w, jnp.float32)

    fused_fits = 4 * per_batch_bytes + slack <= budget

    if fused_fits and not force_two_pass:
        # ---------------- single-pass fused path ----------------
        b_tile = _pick_batch_tile(B, per_batch_bytes, budget)
        nb = B // b_tile
        needed = 4 * b_tile * per_batch_bytes + slack
        vmem_limit = int(min(max(needed, 32 << 20), budget))
        cost = pl.CostEstimate(flops=3 * B * C * HW,
                               transcendentals=B * C,
                               bytes_accessed=2 * B * C * HW * isz)
        out = pl.pallas_call(
            functools.partial(_eca_fused_kernel, k=kernel_size,
                              hw_real=HW, b_tile=b_tile),
            out_shape=jax.ShapeDtypeStruct((B, C, HW), x.dtype),
            grid_spec=pltpu.PrefetchScalarGridSpec(
                num_scalar_prefetch=1,                 # w lands in SMEM
                grid=(nb,),
                # Last two block dims equal the full array dims -> no padding
                # needed even when C % 8 != 0 or HW % 128 != 0.
                in_specs=[pl.BlockSpec((b_tile, C, HW),
                                       lambda i, wref: (i, 0, 0))],
                out_specs=pl.BlockSpec((b_tile, C, HW),
                                       lambda i, wref: (i, 0, 0)),
            ),
            compiler_params=pltpu.CompilerParams(
                dimension_semantics=("parallel",),
                vmem_limit_bytes=vmem_limit,
            ),
            cost_estimate=cost,
        )(w, x_flat)
        return out.reshape(B, C, H, W)

    # ---------------- two-pass spatially tiled fallback ----------------
    hw_pad = ((HW + 127) // 128) * 128
    if spatial_tile is not None:
        sp_tile = int(spatial_tile)
    else:
        max_sp = max(128, ((budget - slack) // (4 * C * isz) // 128) * 128)
        sp_tile = min(hw_pad, max_sp)
    sp_tile = max(128, (sp_tile // 128) * 128)
    n_sp = -(-HW // sp_tile)

    # Pass 1: pooled mean + channel conv + sigmoid  -> gate (B, C, 1) f32
    vmem1 = int(min(max(2 * C * sp_tile * isz + slack, 32 << 20), budget))
    cost1 = pl.CostEstimate(flops=2 * B * C * HW,
                            transcendentals=B * C,
                            bytes_accessed=B * C * HW * isz + B * C * 4)
    gate = pl.pallas_call(
        functools.partial(_eca_pool_gate_kernel, k=kernel_size,
                          hw_real=HW, sp_tile=sp_tile),
        out_shape=jax.ShapeDtypeStruct((B, C, 1), jnp.float32),
        grid_spec=pltpu.PrefetchScalarGridSpec(
            num_scalar_prefetch=1,
            grid=(B, n_sp),
            in_specs=[pl.BlockSpec((pl.Squeezed(), C, sp_tile),
                                   lambda b, s, wref: (b, 0, s))],
            out_specs=pl.BlockSpec((pl.Squeezed(), C, 1),
                                   lambda b, s, wref: (b, 0, 0)),
        ),
        compiler_params=pltpu.CompilerParams(
            dimension_semantics=("parallel", "arbitrary"),
            vmem_limit_bytes=vmem1,
        ),
        cost_estimate=cost1,
    )(w, x_flat)

    # Pass 2: tiled gate-apply (re-reads x once; ~1.5x total HBM traffic)
    vmem2 = int(min(max(4 * C * sp_tile * isz + slack, 32 << 20), budget))
    cost2 = pl.CostEstimate(flops=B * C * HW,
                            transcendentals=0,
                            bytes_accessed=2 * B * C * HW * isz + B * C * 4)
    out = pl.pallas_call(
        _eca_apply_kernel,
        out_shape=jax.ShapeDtypeStruct((B, C, HW), x.dtype),
        grid_spec=pltpu.PrefetchScalarGridSpec(
            num_scalar_prefetch=0,
            grid=(B, n_sp),
            in_specs=[pl.BlockSpec((pl.Squeezed(), C, sp_tile),
                                   lambda b, s: (b, 0, s)),
                      pl.BlockSpec((pl.Squeezed(), C, 1),
                                   lambda b, s: (b, 0, 0))],
            out_specs=pl.BlockSpec((pl.Squeezed(), C, sp_tile),
                                   lambda b, s: (b, 0, s)),
        ),
        compiler_params=pltpu.CompilerParams(
            dimension_semantics=("parallel", "parallel"),
            vmem_limit_bytes=vmem2,
        ),
        cost_estimate=cost2,
    )(x_flat, gate)
    return out.reshape(B, C, H, W)


def eca_kernel_size(channel, gamma=2, b=1):
    t = int(abs((math.log2(channel) + b) / gamma))
    return t if t % 2 else t + 1


def eca_reference(x, w, k):
    """Pure-JAX reference matching the PyTorch module."""
    pad = (k - 1) // 2
    y = jnp.mean(x, axis=(2, 3))                                # (B, C)
    yp = jnp.pad(y, ((0, 0), (pad, pad)))
    conv = jnp.zeros_like(y)
    for j in range(k):
        conv = conv + w[j] * yp[:, j:j + y.shape[1]]
    gate = jax.nn.sigmoid(conv)[:, :, None, None]
    return x * gate


if __name__ == "__main__":
    # C=20 / H=W=14 exercise unaligned C (not /8) and HW (not /128) with
    # full-dim blocks (no padding), and B=4 exercises batch tiling (b_tile=2).
    B, C, H, W = 4, 20, 14, 14
    k = eca_kernel_size(C)                                       # C=20 -> k=3

    key = jax.random.PRNGKey(0)
    kx, kw = jax.random.split(key)
    x = jax.random.normal(kx, (B, C, H, W), dtype=jnp.float32)
    # Deterministic conv1d weight init (uniform in +/- 1/sqrt(fan_in), fan_in=k).
    bound = 1.0 / math.sqrt(k)
    w = jax.random.uniform(kw, (k,), minval=-bound, maxval=bound,
                           dtype=jnp.float32)

    ref = eca_reference(x, w, k)

    # Fused single-pass path (default for shapes that fit VMEM).
    out = jax.block_until_ready(eca_forward(x, w, k))
    assert out.shape == (B, C, H, W)
    assert jnp.allclose(out, ref, atol=1e-5, rtol=1e-5), "fused path mismatch"

    # Also exercise the two-pass spatially tiled fallback (used for slabs too
    # big for VMEM, e.g. large feature maps on v7x); sp_tile=128 forces a
    # partial last spatial tile and a multi-step reduction.
    out2 = jax.block_until_ready(
        eca_forward(x, w, k, force_two_pass=True, spatial_tile=128))
    assert jnp.allclose(out2, ref, atol=1e-5, rtol=1e-5), "two-pass mismatch"

    print("KERNEL_OK")
</pallas_src>

<mosaic_0001>
module attributes {stable_mosaic.version = 11 : i64} {
  func.func @_eca_fused_kernel(%arg0: i32, %arg1: memref<3xf32, #tpu.memory_space<smem>>, %arg2: memref<2x20x196xf32, #tpu.memory_space<vmem>>, %arg3: memref<2x20x196xf32, #tpu.memory_space<vmem>>) attributes {dimension_semantics = [#tpu.dimension_semantics<parallel>], iteration_bounds = array<i64: 2>, scalar_prefetch = 1 : i64, scratch_operands = 0 : i64, tpu.core_type = #tpu.core_type<tc>, window_params = [{transform_indices = @transform_0, window_bounds = array<i64: 2, 20, 196>}, {transform_indices = @transform_1, window_bounds = array<i64: 2, 20, 196>}]} {
    %c0 = arith.constant 0 : index
    %c0_0 = arith.constant 0 : index
    %c0_1 = arith.constant 0 : index
    %0 = vector.load %arg2[%c0, %c0_0, %c0_1] : memref<2x20x196xf32, #tpu.memory_space<vmem>>, vector<1x20x196xf32>
    %1 = vector.shape_cast %0 : vector<1x20x196xf32> to vector<20x196xf32>
    %cst = arith.constant dense<0.000000e+00> : vector<20xf32>
    %2 = vector.multi_reduction <add>, %1, %cst [1] : vector<20x196xf32> to vector<20xf32>
    %3 = vector.shape_cast %2 : vector<20xf32> to vector<20x1xf32>
    %cst_2 = arith.constant 0.00510204071 : f32
    %4 = vector.broadcast %cst_2 : f32 to vector<20x1xf32>
    %5 = arith.mulf %3, %4 : vector<20x1xf32>
    %6 = tpu.iota {dimensions = array<i32: 0>} : vector<20x1xi32>
    %cst_3 = arith.constant 0.000000e+00 : f32
    %7 = vector.broadcast %cst_3 : f32 to vector<20x1xf32>
    %c1_i32 = arith.constant 1 : i32
    %8 = tpu.dynamic_rotate %5 by %c1_i32 dim 0 : vector<20x1xf32>, i32 -> vector<20x1xf32>
    %c-1_i32 = arith.constant -1 : i32
    %9 = vector.broadcast %c-1_i32 : i32 to vector<20x1xi32>
    %10 = arith.addi %6, %9 : vector<20x1xi32>
    %c0_i32 = arith.constant 0 : i32
    %11 = vector.broadcast %c0_i32 : i32 to vector<20x1xi32>
    %12 = arith.cmpi sge, %10, %11 : vector<20x1xi32>
    %c20_i32 = arith.constant 20 : i32
    %13 = vector.broadcast %c20_i32 : i32 to vector<20x1xi32>
    %14 = arith.cmpi slt, %10, %13 : vector<20x1xi32>
    %15 = arith.andi %12, %14 : vector<20x1xi1>
    %c0_4 = arith.constant 0 : index
    %16 = memref.load %arg1[%c0_4] : memref<3xf32, #tpu.memory_space<smem>>
    %cst_5 = arith.constant 0.000000e+00 : f32
    %17 = vector.broadcast %cst_5 : f32 to vector<20x1xf32>
    %18 = arith.select %15, %8, %17 : vector<20x1xi1>, vector<20x1xf32>
    %19 = vector.broadcast %16 : f32 to vector<20x1xf32>
    %20 = arith.mulf %19, %18 : vector<20x1xf32>
    %21 = arith.addf %7, %20 : vector<20x1xf32>
    %c0_i32_6 = arith.constant 0 : i32
    %22 = tpu.dynamic_rotate %5 by %c0_i32_6 dim 0 : vector<20x1xf32>, i32 -> vector<20x1xf32>
    %c0_i32_7 = arith.constant 0 : i32
    %23 = vector.broadcast %c0_i32_7 : i32 to vector<20x1xi32>
    %24 = arith.addi %6, %23 : vector<20x1xi32>
    %c0_i32_8 = arith.constant 0 : i32
    %25 = vector.broadcast %c0_i32_8 : i32 to vector<20x1xi32>
    %26 = arith.cmpi sge, %24, %25 : vector<20x1xi32>
    %c20_i32_9 = arith.constant 20 : i32
    %27 = vector.broadcast %c20_i32_9 : i32 to vector<20x1xi32>
    %28 = arith.cmpi slt, %24, %27 : vector<20x1xi32>
    %29 = arith.andi %26, %28 : vector<20x1xi1>
    %c1 = arith.constant 1 : index
    %30 = memref.load %arg1[%c1] : memref<3xf32, #tpu.memory_space<smem>>
    %cst_10 = arith.constant 0.000000e+00 : f32
    %31 = vector.broadcast %cst_10 : f32 to vector<20x1xf32>
    %32 = arith.select %29, %22, %31 : vector<20x1xi1>, vector<20x1xf32>
    %33 = vector.broadcast %30 : f32 to vector<20x1xf32>
    %34 = arith.mulf %33, %32 : vector<20x1xf32>
    %35 = arith.addf %21, %34 : vector<20x1xf32>
    %c19_i32 = arith.constant 19 : i32
    %36 = tpu.dynamic_rotate %5 by %c19_i32 dim 0 : vector<20x1xf32>, i32 -> vector<20x1xf32>
    %c1_i32_11 = arith.constant 1 : i32
    %37 = vector.broadcast %c1_i32_11 : i32 to vector<20x1xi32>
    %38 = arith.addi %6, %37 : vector<20x1xi32>
    %c0_i32_12 = arith.constant 0 : i32
    %39 = vector.broadcast %c0_i32_12 : i32 to vector<20x1xi32>
    %40 = arith.cmpi sge, %38, %39 : vector<20x1xi32>
    %c20_i32_13 = arith.constant 20 : i32
    %41 = vector.broadcast %c20_i32_13 : i32 to vector<20x1xi32>
    %42 = arith.cmpi slt, %38, %41 : vector<20x1xi32>
    %43 = arith.andi %40, %42 : vector<20x1xi1>
    %c2 = arith.constant 2 : index
    %44 = memref.load %arg1[%c2] : memref<3xf32, #tpu.memory_space<smem>>
    %cst_14 = arith.constant 0.000000e+00 : f32
    %45 = vector.broadcast %cst_14 : f32 to vector<20x1xf32>
    %46 = arith.select %43, %36, %45 : vector<20x1xi1>, vector<20x1xf32>
    %47 = vector.broadcast %44 : f32 to vector<20x1xf32>
    %48 = arith.mulf %47, %46 : vector<20x1xf32>
    %49 = arith.addf %35, %48 : vector<20x1xf32>
    %50 = arith.negf %49 : vector<20x1xf32>
    %51 = math.exp %50 : vector<20x1xf32>
    %cst_15 = arith.constant 1.000000e+00 : f32
    %52 = vector.broadcast %cst_15 : f32 to vector<20x1xf32>
    %53 = arith.addf %52, %51 : vector<20x1xf32>
    %54 = arith.divf %52, %53 : vector<20x1xf32>
    %55 = vector.broadcast %54 : vector<20x1xf32> to vector<20x196xf32>
    %56 = arith.mulf %1, %55 : vector<20x196xf32>
    %c0_16 = arith.constant 0 : index
    %c0_17 = arith.constant 0 : index
    %c0_18 = arith.constant 0 : index
    %57 = vector.load %arg3[%c0_16, %c0_17, %c0_18] : memref<2x20x196xf32, #tpu.memory_space<vmem>>, vector<1x20x196xf32>
    %58 = vector.shape_cast %57 : vector<1x20x196xf32> to vector<20x196xf32>
    %59 = vector.shape_cast %56 : vector<20x196xf32> to vector<1x20x196xf32>
    tpu.vector_store %arg3[%c0_16, %c0_17, %c0_18], %59 {strides = array<i32>} : memref<2x20x196xf32, #tpu.memory_space<vmem>>, vector<1x20x196xf32>,
    %c1_19 = arith.constant 1 : index
    %c0_20 = arith.constant 0 : index
    %c0_21 = arith.constant 0 : index
    %60 = vector.load %arg2[%c1_19, %c0_20, %c0_21] : memref<2x20x196xf32, #tpu.memory_space<vmem>>, vector<1x20x196xf32>
    %61 = vector.shape_cast %60 : vector<1x20x196xf32> to vector<20x196xf32>
    %cst_22 = arith.constant dense<0.000000e+00> : vector<20xf32>
    %62 = vector.multi_reduction <add>, %61, %cst_22 [1] : vector<20x196xf32> to vector<20xf32>
    %63 = vector.shape_cast %62 : vector<20xf32> to vector<20x1xf32>
    %cst_23 = arith.constant 0.00510204071 : f32
    %64 = vector.broadcast %cst_23 : f32 to vector<20x1xf32>
    %65 = arith.mulf %63, %64 : vector<20x1xf32>
    %66 = tpu.iota {dimensions = array<i32: 0>} : vector<20x1xi32>
    %cst_24 = arith.constant 0.000000e+00 : f32
    %67 = vector.broadcast %cst_24 : f32 to vector<20x1xf32>
    %c1_i32_25 = arith.constant 1 : i32
    %68 = tpu.dynamic_rotate %65 by %c1_i32_25 dim 0 : vector<20x1xf32>, i32 -> vector<20x1xf32>
    %c-1_i32_26 = arith.constant -1 : i32
    %69 = vector.broadcast %c-1_i32_26 : i32 to vector<20x1xi32>
    %70 = arith.addi %66, %69 : vector<20x1xi32>
    %c0_i32_27 = arith.constant 0 : i32
    %71 = vector.broadcast %c0_i32_27 : i32 to vector<20x1xi32>
    %72 = arith.cmpi sge, %70, %71 : vector<20x1xi32>
    %c20_i32_28 = arith.constant 20 : i32
    %73 = vector.broadcast %c20_i32_28 : i32 to vector<20x1xi32>
    %74 = arith.cmpi slt, %70, %73 : vector<20x1xi32>
    %75 = arith.andi %72, %74 : vector<20x1xi1>
    %c0_29 = arith.constant 0 : index
    %76 = memref.load %arg1[%c0_29] : memref<3xf32, #tpu.memory_space<smem>>
    %cst_30 = arith.constant 0.000000e+00 : f32
    %77 = vector.broadcast %cst_30 : f32 to vector<20x1xf32>
    %78 = arith.select %75, %68, %77 : vector<20x1xi1>, vector<20x1xf32>
    %79 = vector.broadcast %76 : f32 to vector<20x1xf32>
    %80 = arith.mulf %79, %78 : vector<20x1xf32>
    %81 = arith.addf %67, %80 : vector<20x1xf32>
    %c0_i32_31 = arith.constant 0 : i32
    %82 = tpu.dynamic_rotate %65 by %c0_i32_31 dim 0 : vector<20x1xf32>, i32 -> vector<20x1xf32>
    %c0_i32_32 = arith.constant 0 : i32
    %83 = vector.broadcast %c0_i32_32 : i32 to vector<20x1xi32>
    %84 = arith.addi %66, %83 : vector<20x1xi32>
    %c0_i32_33 = arith.constant 0 : i32
    %85 = vector.broadcast %c0_i32_33 : i32 to vector<20x1xi32>
    %86 = arith.cmpi sge, %84, %85 : vector<20x1xi32>
    %c20_i32_34 = arith.constant 20 : i32
    %87 = vector.broadcast %c20_i32_34 : i32 to vector<20x1xi32>
    %88 = arith.cmpi slt, %84, %87 : vector<20x1xi32>
    %89 = arith.andi %86, %88 : vector<20x1xi1>
    %c1_35 = arith.constant 1 : index
    %90 = memref.load %arg1[%c1_35] : memref<3xf32, #tpu.memory_space<smem>>
    %cst_36 = arith.constant 0.000000e+00 : f32
    %91 = vector.broadcast %cst_36 : f32 to vector<20x1xf32>
    %92 = arith.select %89, %82, %91 : vector<20x1xi1>, vector<20x1xf32>
    %93 = vector.broadcast %90 : f32 to vector<20x1xf32>
    %94 = arith.mulf %93, %92 : vector<20x1xf32>
    %95 = arith.addf %81, %94 : vector<20x1xf32>
    %c19_i32_37 = arith.constant 19 : i32
    %96 = tpu.dynamic_rotate %65 by %c19_i32_37 dim 0 : vector<20x1xf32>, i32 -> vector<20x1xf32>
    %c1_i32_38 = arith.constant 1 : i32
    %97 = vector.broadcast %c1_i32_38 : i32 to vector<20x1xi32>
    %98 = arith.addi %66, %97 : vector<20x1xi32>
    %c0_i32_39 = arith.constant 0 : i32
    %99 = vector.broadcast %c0_i32_39 : i32 to vector<20x1xi32>
    %100 = arith.cmpi sge, %98, %99 : vector<20x1xi32>
    %c20_i32_40 = arith.constant 20 : i32
    %101 = vector.broadcast %c20_i32_40 : i32 to vector<20x1xi32>
    %102 = arith.cmpi slt, %98, %101 : vector<20x1xi32>
    %103 = arith.andi %100, %102 : vector<20x1xi1>
    %c2_41 = arith.constant 2 : index
    %104 = memref.load %arg1[%c2_41] : memref<3xf32, #tpu.memory_space<smem>>
    %cst_42 = arith.constant 0.000000e+00 : f32
    %105 = vector.broadcast %cst_42 : f32 to vector<20x1xf32>
    %106 = arith.select %103, %96, %105 : vector<20x1xi1>, vector<20x1xf32>
    %107 = vector.broadcast %104 : f32 to vector<20x1xf32>
    %108 = arith.mulf %107, %106 : vector<20x1xf32>
    %109 = arith.addf %95, %108 : vector<20x1xf32>
    %110 = arith.negf %109 : vector<20x1xf32>
    %111 = math.exp %110 : vector<20x1xf32>
    %cst_43 = arith.constant 1.000000e+00 : f32
    %112 = vector.broadcast %cst_43 : f32 to vector<20x1xf32>
    %113 = arith.addf %112, %111 : vector<20x1xf32>
    %114 = arith.divf %112, %113 : vector<20x1xf32>
    %115 = vector.broadcast %114 : vector<20x1xf32> to vector<20x196xf32>
    %116 = arith.mulf %61, %115 : vector<20x196xf32>
    %c1_44 = arith.constant 1 : index
    %c0_45 = arith.constant 0 : index
    %c0_46 = arith.constant 0 : index
    %117 = vector.load %arg3[%c1_44, %c0_45, %c0_46] : memref<2x20x196xf32, #tpu.memory_space<vmem>>, vector<1x20x196xf32>
    %118 = vector.shape_cast %117 : vector<1x20x196xf32> to vector<20x196xf32>
    %119 = vector.shape_cast %116 : vector<20x196xf32> to vector<1x20x196xf32>
    tpu.vector_store %arg3[%c1_44, %c0_45, %c0_46], %119 {strides = array<i32>} : memref<2x20x196xf32, #tpu.memory_space<vmem>>, vector<1x20x196xf32>,
    return
  }
  func.func @transform_0(%arg0: i32, %arg1: memref<3xf32, #tpu.memory_space<smem>>) -> (i32, i32, i32) {
    %c0_i32 = arith.constant 0 : i32
    %c0_i32_0 = arith.constant 0 : i32
    %c0_i32_1 = arith.constant 0 : i32
    return %arg0, %c0_i32, %c0_i32_0 : i32, i32, i32
  }
  func.func @transform_1(%arg0: i32, %arg1: memref<3xf32, #tpu.memory_space<smem>>) -> (i32, i32, i32) {
    %c0_i32 = arith.constant 0 : i32
    %c0_i32_0 = arith.constant 0 : i32
    %c0_i32_1 = arith.constant 0 : i32
    return %arg0, %c0_i32, %c0_i32_0 : i32, i32, i32
  }
}

</mosaic_0001>

<llo_original>
// kernel: tpu_custom_call.1
$region0: #{tpu_custom_call.1}
  #allocation0 [shape = 'u32[]', space=smem, size = 0x4, offset = 0x4, fixed_abs, tag = 'smem constant byte address 0x4 - core index']
  #allocation1 [shape = 'u32[144,128]{1,0:T(1,128)}', space=vmem, size = 0x12000, scoped, tag = 'internal scratch']
  #allocation2 [shape = 's32[1]{0}', space=sflag, size = 0x4, scoped, tag = 'scoped memory for tpu_custom_call.1']
  #allocation3 [shape = 'u8[512]{0}', space=smem, size = 0x200, scoped, tag = 'prefetched SMEM operand 0']
  %s0 = inlined_call_operand.vmem [shape: f32[3], index: 0, kind: input, shape index: {}]
  %s1 = inlined_call_operand.vmem [shape: f32[4,20,196], index: 1, kind: input, shape index: {}]
  %s2 = inlined_call_operand.vmem [shape: f32[4,20,196], index: 2, kind: output, shape index: {}]
  %s3 = sld [smem:[#allocation0]]
  $region37: #{tpu_custom_call.1} parent=0
    _
  %s5 = ssub.s32 1, %s3
  %s6 = scalar_select 0, %s5, %s3
  %s7 = sshll.u32 %s0, 4
  %s8 = int_to_ptr.vmem [resolvable:$true] %s7
  %10 = dma.vmem_to_smem %s8, 16, [#allocation3], [#allocation2]
  %11 = dma.done [#allocation2], 16
  %12 = sfence
  loop: start=0, step=1, limit=4
  $region2: #{tpu_custom_call.1} parent=0 // loop_pre_header
    _
  $region3: #{tpu_custom_call.1} parent=0 // loop_header
    %s14 = sphi 0, %s18
    %p15 = scmp.ge.s32.totalorder %s14, 4
    %s24 = sphi 0, %s26
    %s27 = sphi 0, %s24
    %s28 = sphi 0, %s27
    %s44 = sphi 0, %s28
    %s50 = sphi 0, %s52
    %s53 = sphi 0, %s50
    %s54 = sphi 0, %s53
    %s70 = sphi 0, %s54
  $region4: #{tpu_custom_call.1} parent=0 // loop_header_branch
    %17 = sbr.rel (%p15) target = $region8
  $region5: #{tpu_custom_call.1} parent=0 // loop_body
    %s19 = ssub.s32 %s14, 1
    %s20 = ssub.s32 %s14, 2
    %s21 = sadd.s32 %s14, 1
    %s22 = ssub.s32 %s14, %s21
    %p23 = scmp.eq.s32.totalorder %s22, 0
    %s25 = sadd.s32 %s24, 1
    %s26 = scalar_select %p23, %s24, %s25
    %p29 = pneg %p23
    %p30 = scmp.eq.s32.totalorder %s14, 1
    %p31 = por %p29, %p30
    %p32 = scmp.ne.s32.totalorder %s24, %s27
    %p33 = scmp.eq.s32.totalorder %s14, 0
    %p34 = por %p32, %p33
    %p35 = scmp.ne.s32.totalorder %s24, %s27
    %p36 = scmp.eq.s32.totalorder %s19, 1
    %p37 = por %p35, %p36
    %p38 = scmp.ne.s32.totalorder %s27, %s28
    %p39 = scmp.eq.s32.totalorder %s19, 0
    %p40 = por %p38, %p39
    %p41 = scmp.ne.s32.totalorder %s27, %s28
    %p42 = scmp.eq.s32.totalorder %s20, 1
    %p43 = por %p41, %p42
    %p45 = scmp.ne.s32.totalorder %s28, %s44
    %p46 = scmp.eq.s32.totalorder %s20, 0
    %p47 = por %p45, %p46
    %s48 = ssub.s32 %s14, %s21
    %p49 = scmp.eq.s32.totalorder %s48, 0
    %s51 = sadd.s32 %s50, 1
    %s52 = scalar_select %p49, %s50, %s51
    %p55 = pneg %p49
    %p56 = scmp.eq.s32.totalorder %s14, 1
    %p57 = por %p55, %p56
    %p58 = scmp.ne.s32.totalorder %s50, %s53
    %p59 = scmp.eq.s32.totalorder %s14, 0
    %p60 = por %p58, %p59
    %p61 = scmp.ne.s32.totalorder %s50, %s53
    %p62 = scmp.eq.s32.totalorder %s19, 1
    %p63 = por %p61, %p62
    %p64 = scmp.ne.s32.totalorder %s53, %s54
    %p65 = scmp.eq.s32.totalorder %s19, 0
    %p66 = por %p64, %p65
    %p67 = scmp.ne.s32.totalorder %s53, %s54
    %p68 = scmp.eq.s32.totalorder %s20, 1
    %p69 = por %p67, %p68
    %p71 = scmp.ne.s32.totalorder %s54, %s70
    %p72 = scmp.eq.s32.totalorder %s20, 0
    %p73 = por %p71, %p72
    %p74 = scmp.le.s32.totalorder 1, %s14
    %p75 = scmp.lt.s32.totalorder %s14, 3
    %p76 = pnand %p74, %p75
    %p77 = pneg %p76
    // Predicated region
    $region9: #{tpu_custom_call.1} parent=5 // pred_check
      _
    $region10: #{tpu_custom_call.1} parent=5 // pred_check_branch
      %79 = sbr.rel (%p76) target = $region12
    $region11: #{tpu_custom_call.1} parent=5 // pred_region
      %s80 = ssub.s32 %s14, 1
    $region12: #{tpu_custom_call.1} parent=5 // pred_fallthru
      _
    %p81 = scmp.lt.s32.totalorder %s14, 2
    // Predicated region
    $region13: #{tpu_custom_call.1} parent=5 // pred_check
      %p82 = pneg %p81
    $region14: #{tpu_custom_call.1} parent=5 // pred_check_branch
      %84 = sbr.rel (%p82) target = $region16
    $region15: #{tpu_custom_call.1} parent=5 // pred_region
      // Predicated region
      $region17: #{tpu_custom_call.1} parent=15 // pred_check
        %p85 = pneg %p34
      $region18: #{tpu_custom_call.1} parent=15 // pred_check_branch
        %87 = sbr.rel (%p85) target = $region20
      $region19: #{tpu_custom_call.1} parent=15 // pred_region
        %s88 = smul.u32 2, %s14
        %p89 = scmp.lt.s32.totalorder %s88, 3
        %s90 = scalar_select %p89, %s88, 3
        %s91 = smul.addr %s90, 6
        %s92 = smul.addr %s91, 8
        %s93 = scalar_lea.vmem %s1, %s92
        %s94 = smul.u32 2, %s14
      $region20: #{tpu_custom_call.1} parent=15 // pred_fallthru
        _
    $region16: #{tpu_custom_call.1} parent=5 // pred_fallthru
      _
    %p95 = scmp.le.s32.totalorder 1, %s14
    %p96 = scmp.lt.s32.totalorder %s14, 3
    %p97 = pnand %p95, %p96
    %p98 = pneg %p97
    // Predicated region
    $region21: #{tpu_custom_call.1} parent=5 // pred_check
      _
    $region22: #{tpu_custom_call.1} parent=5 // pred_check_branch
      %100 = sbr.rel (%p97) target = $region24
    $region23: #{tpu_custom_call.1} parent=5 // pred_region
      %s101 = ssub.s32 %s14, 1
      %s102 = smul.u32 2, %s19
      %p103 = scmp.lt.s32.totalorder %s102, 3
      %s104 = scalar_select %p103, %s102, 3
      %s105 = smul.addr %s104, 6
      %s106 = smul.addr %s105, 8
      %s107 = scalar_lea.vmem %s1, %s106
      %p108 = pneg %p40
      %p109 = pneg %p37
      %p110 = pneg %p66
      %p111 = pneg %p63
      %s112 = smul.u32 2, %s19
      %p113 = scmp.lt.s32.totalorder %s112, 3
      %s114 = scalar_select %p113, %s112, 3
      %s115 = smul.addr %s114, 6
      %s116 = smul.addr %s115, 8
      %s117 = scalar_lea.vmem %s2, %s116
      %s118 = smul.u32 2, %s19
      %p119 = scmp.lt.s32.totalorder %s118, 3
      %s120 = scalar_select %p119, %s118, 3
      %s121 = smul.addr %s120, 6
      %s122 = smul.addr %s121, 8
      %s123 = scalar_lea.vmem %s1, %s122
      %s124 = smul.u32 2, %s19
      %s125 = smul.u32 2, %s19
      %p126 = scmp.lt.s32.totalorder %s125, 3
      %s127 = scalar_select %p126, %s125, 3
      %s128 = smul.addr %s127, 6
      %s129 = smul.addr %s128, 8
      %s130 = scalar_lea.vmem %s2, %s129
      %s131 = smul.u32 2, %s19
      %v132 = vld [vmem:[%s123] sm:$0xff]
      %v133 = vld [vmem:[%s123 + $0x8] sm:$0xff]
      %v134 = vld [vmem:[%s123 + $0x10] sm:$0xff]
      %v135 = vld [vmem:[%s123 + $0x18] sm:$0xff]
      %v136 = vld [vmem:[%s123 + $0x20] sm:$0xf]
      %v137 = vld [vmem:[%s123 + $0x28] sm:$0xf]
      %vm138 = vcmask 556032
      %v139 = vsel %vm138, %v133, 0.0
      %v140 = vadd.f32 %v132, %v139
      %141 = vadd.xlane.f32.xlu0 %v140
      %v142 = vpop.xlane.xlu0 %141
      %v143 = vsel %vm138, %v135, 0.0
      %v144 = vadd.f32 %v134, %v143
      %145 = vadd.xlane.f32.xlu0 %v144
      %v146 = vpop.xlane.xlu0 %145
      %vm147 = vcmask 1043456
      %v148 = vsel %vm147, %v136, 0.0
      %vm149 = vcmask 551936
      %v150 = vsel %vm149, %v137, 0.0
      %v151 = vadd.f32 %v148, %v150
      %152 = vadd.xlane.f32.xlu0 %v151
      %v153 = vpop.xlane.xlu0 %152
      %v154 = vmul.f32 %v142, 0.0051020407
      %v155 = vmul.f32 %v146, 0.0051020407
      %v156 = vmul.f32 %v153, 0.0051020407
      %v157 = vlaneseq
      %v158 = vshrl.u32 %v157, 7
      %v159 = vadd.s32 %v158, 8
      %v160 = vadd.s32 %v158, 16
      %vm161 = vcmask 1047556
      %v162 = vrot.slane %v154, 4
      %v163 = vsel %vm161, %v162, %v156
      %v164 = vrot.slane %v155, 4
      %v165 = vrot.slane %v163, 4
      %v166 = vsel %vm161, %v164, %v162
      %v167 = vsel %vm161, %v165, %v164
      %v168 = vadd.s32 %v158, 4294967295
      %v169 = vadd.s32 %v159, 4294967295
      %v170 = vadd.s32 %v160, 4294967295
      %vm171 = vcmp.ge.s32.totalorder %v168, 0
      %vm172 = vcmp.ge.s32.totalorder %v169, 0
      %vm173 = vcmp.ge.s32.totalorder %v170, 0
      %vm174 = vcmp.lt.s32.totalorder %v168, 20
      %vm175 = vcmp.lt.s32.totalorder %v169, 20
      %vm176 = vcmp.lt.s32.totalorder %v170, 20
      %vm177 = vmand %vm171, %vm174
      %vm178 = vmand %vm172, %vm175
      %vm179 = vmand %vm173, %vm176
      %s180 = sld [smem:[#allocation3]]
      %vm184 = vcmask 1044480
      %v185 = vrot.slane %v163, 3
      %v186 = vrot.slane %v166, 3
      %v187 = vsel %vm184, %v185, %v186
      %v188 = vrot.slane %v167, 3
      %v189 = vsel %vm184, %v186, %v188
      %v193 = vsel %vm177, %v187, 0.0
      %v194 = vsel %vm178, %v189, 0.0
      %v195 = vsel %vm179, %v188, 0.0
      %v196 = vstv %s180
      %v197 = vmul.f32 %v196, %v193
      %v198 = vmul.f32 %v196, %v194
      %v199 = vmul.f32 %v196, %v195
      %v200 = vadd.f32 %v197, 0.0
      %v201 = vadd.f32 %v198, 0.0
      %v202 = vadd.f32 %v199, 0.0
      %vm203 = vcmp.ge.s32.totalorder %v158, 0
      %vm204 = vcmp.ge.s32.totalorder %v159, 0
      %vm205 = vcmp.ge.s32.totalorder %v160, 0
      %vm206 = vcmp.lt.s32.totalorder %v158, 20
      %vm207 = vcmp.lt.s32.totalorder %v159, 20
      %vm208 = vcmp.lt.s32.totalorder %v160, 20
      %vm209 = vmand %vm203, %vm206
      %vm210 = vmand %vm204, %vm207
      %vm211 = vmand %vm205, %vm208
      %s212 = sld [smem:[#allocation3 + $0x1]]
      %v213 = vrot.slane %v163, 4
      %v214 = vrot.slane %v166, 4
      %v215 = vsel %vm147, %v213, %v214
      %v216 = vrot.slane %v167, 4
      %v217 = vsel %vm147, %v214, %v216
      %v221 = vsel %vm209, %v215, 0.0
      %v222 = vsel %vm210, %v217, 0.0
      %v223 = vsel %vm211, %v216, 0.0
      %v224 = vstv %s212
      %v225 = vmul.f32 %v224, %v221
      %v226 = vmul.f32 %v224, %v222
      %v227 = vmul.f32 %v224, %v223
      %v228 = vadd.f32 %v200, %v225
      %v229 = vadd.f32 %v201, %v226
      %v230 = vadd.f32 %v202, %v227
      %v231 = vadd.s32 %v158, 1
      %v232 = vadd.s32 %v159, 1
      %v233 = vadd.s32 %v160, 1
      %vm234 = vcmp.ge.s32.totalorder %v231, 0
      %vm235 = vcmp.ge.s32.totalorder %v232, 0
      %vm236 = vcmp.ge.s32.totalorder %v233, 0
      %vm237 = vcmp.lt.s32.totalorder %v231, 20
      %vm238 = vcmp.lt.s32.totalorder %v232, 20
      %vm239 = vcmp.lt.s32.totalorder %v233, 20
      %vm240 = vmand %vm234, %vm237
      %vm241 = vmand %vm235, %vm238
      %vm242 = vmand %vm236, %vm239
      %s243 = sld [smem:[#allocation3 + $0x2]]
      %vm246 = vcmask 1046528
      %v247 = vrot.slane %v154, 1
      %v248 = vrot.slane %v155, 1
      %v249 = vsel %vm246, %v247, %v248
      %v250 = vrot.slane %v163, 1
      %v251 = vsel %vm246, %v248, %v250
      %v255 = vsel %vm240, %v249, 0.0
      %v256 = vsel %vm241, %v251, 0.0
      %v257 = vsel %vm242, %v250, 0.0
      %v258 = vstv %s243
      %v259 = vmul.f32 %v258, %v255
      %v260 = vmul.f32 %v258, %v256
      %v261 = vmul.f32 %v258, %v257
      %v262 = vadd.f32 %v228, %v259
      %v263 = vadd.f32 %v229, %v260
      %v264 = vadd.f32 %v230, %v261
      %v265 = vxor.u32 %v262, 2147483648
      %v266 = vxor.u32 %v263, 2147483648
      %v267 = vxor.u32 %v264, 2147483648
      %v268 = vmul.f32 %v265, 1.442695
      %v269 = vpow.pop %v268
      %v270 = vmul.f32 %v266, 1.442695
      %v271 = vpow.pop %v270
      %v272 = vmul.f32 %v267, 1.442695
      %v273 = vpow.pop %v272
      %v274 = vadd.f32 %v269, 1.0
      %v275 = vadd.f32 %v271, 1.0
      %v276 = vadd.f32 %v273, 1.0
      %v277 = vrcp.pop %v274
      %v278 = vmul.f32 1.0, %v277
      %v279 = vrcp.pop %v275
      %v280 = vmul.f32 1.0, %v279
      %v281 = vrcp.pop %v276
      %v282 = vmul.f32 1.0, %v281
      %284 = vset.pattern.permute.xlu0 0
      %285 = vperm.xlu0 %284, %v278
      %v286 = vpop.permute.xlu0 %285
      %289 = vset.pattern.permute.xlu0 0
      %290 = vperm.xlu0 %289, %v280
      %v291 = vpop.permute.xlu0 %290
      %294 = vset.pattern.permute.xlu0 0
      %295 = vperm.xlu0 %294, %v282
      %v296 = vpop.permute.xlu0 %295
      %v298 = vmul.f32 %v132, %v286
      %v299 = vmul.f32 %v133, %v286
      %v300 = vmul.f32 %v134, %v291
      %v301 = vmul.f32 %v135, %v291
      %v302 = vmul.f32 %v136, %v296
      %v303 = vmul.f32 %v137, %v296
      %304 = vst [vmem:[%s130] sm:$0xff] %v298
      %305 = vst.msk [vmem:[%s130 + $0x8] sm:$0xff] %vm138, %v299
      %306 = vst [vmem:[%s130 + $0x10] sm:$0xff] %v300
      %307 = vst.msk [vmem:[%s130 + $0x18] sm:$0xff] %vm138, %v301
      %308 = vst [vmem:[%s130 + $0x20] sm:$0xf] %v302
      %309 = vst.msk [vmem:[%s130 + $0x28] sm:$0xf] %vm149, %v303
      %s310 = scalar_lea.vmem %s123, 48
      %v311 = vld [vmem:[%s310] sm:$0xff]
      %v312 = vld [vmem:[%s310 + $0x8] sm:$0xff]
      %v313 = vld [vmem:[%s310 + $0x10] sm:$0xff]
      %v314 = vld [vmem:[%s310 + $0x18] sm:$0xff]
      %v315 = vld [vmem:[%s310 + $0x20] sm:$0xf]
      %v316 = vld [vmem:[%s310 + $0x28] sm:$0xf]
      %v317 = vsel %vm138, %v312, 0.0
      %v318 = vadd.f32 %v311, %v317
      %319 = vadd.xlane.f32.xlu0 %v318
      %v320 = vpop.xlane.xlu0 %319
      %v321 = vsel %vm138, %v314, 0.0
      %v322 = vadd.f32 %v313, %v321
      %323 = vadd.xlane.f32.xlu0 %v322
      %v324 = vpop.xlane.xlu0 %323
      %v325 = vsel %vm147, %v315, 0.0
      %v326 = vsel %vm149, %v316, 0.0
      %v327 = vadd.f32 %v325, %v326
      %328 = vadd.xlane.f32.xlu0 %v327
      %v329 = vpop.xlane.xlu0 %328
      %v330 = vmul.f32 %v320, 0.0051020407
      %v331 = vmul.f32 %v324, 0.0051020407
      %v332 = vmul.f32 %v329, 0.0051020407
      %v333 = vrot.slane %v330, 4
      %v334 = vsel %vm161, %v333, %v332
      %v335 = vrot.slane %v331, 4
      %v336 = vrot.slane %v334, 4
      %v337 = vsel %vm161, %v335, %v333
      %v338 = vsel %vm161, %v336, %v335
      %s339 = sld [smem:[#allocation3]]
      %v343 = vrot.slane %v334, 3
      %v344 = vrot.slane %v337, 3
      %v345 = vsel %vm184, %v343, %v344
      %v346 = vrot.slane %v338, 3
      %v347 = vsel %vm184, %v344, %v346
      %v351 = vsel %vm177, %v345, 0.0
      %v352 = vsel %vm178, %v347, 0.0
      %v353 = vsel %vm179, %v346, 0.0
      %v354 = vstv %s339
      %v355 = vmul.f32 %v354, %v351
      %v356 = vmul.f32 %v354, %v352
      %v357 = vmul.f32 %v354, %v353
      %v358 = vadd.f32 %v355, 0.0
      %v359 = vadd.f32 %v356, 0.0
      %v360 = vadd.f32 %v357, 0.0
      %s361 = sld [smem:[#allocation3 + $0x1]]
      %v362 = vrot.slane %v334, 4
      %v363 = vrot.slane %v337, 4
      %v364 = vsel %vm147, %v362, %v363
      %v365 = vrot.slane %v338, 4
      %v366 = vsel %vm147, %v363, %v365
      %v370 = vsel %vm209, %v364, 0.0
      %v371 = vsel %vm210, %v366, 0.0
      %v372 = vsel %vm211, %v365, 0.0
      %v373 = vstv %s361
      %v374 = vmul.f32 %v373, %v370
      %v375 = vmul.f32 %v373, %v371
      %v376 = vmul.f32 %v373, %v372
      %v377 = vadd.f32 %v358, %v374
      %v378 = vadd.f32 %v359, %v375
      %v379 = vadd.f32 %v360, %v376
      %s380 = sld [smem:[#allocation3 + $0x2]]
      %v383 = vrot.slane %v330, 1
      %v384 = vrot.slane %v331, 1
      %v385 = vsel %vm246, %v383, %v384
      %v386 = vrot.slane %v334, 1
      %v387 = vsel %vm246, %v384, %v386
      %v391 = vsel %vm240, %v385, 0.0
      %v392 = vsel %vm241, %v387, 0.0
      %v393 = vsel %vm242, %v386, 0.0
      %v394 = vstv %s380
      %v395 = vmul.f32 %v394, %v391
      %v396 = vmul.f32 %v394, %v392
      %v397 = vmul.f32 %v394, %v393
      %v398 = vadd.f32 %v377, %v395
      %v399 = vadd.f32 %v378, %v396
      %v400 = vadd.f32 %v379, %v397
      %v401 = vxor.u32 %v398, 2147483648
      %v402 = vxor.u32 %v399, 2147483648
      %v403 = vxor.u32 %v400, 2147483648
      %v404 = vmul.f32 %v401, 1.442695
      %v405 = vpow.pop %v404
      %v406 = vmul.f32 %v402, 1.442695
      %v407 = vpow.pop %v406
      %v408 = vmul.f32 %v403, 1.442695
      %v409 = vpow.pop %v408
      %v410 = vadd.f32 %v405, 1.0
      %v411 = vadd.f32 %v407, 1.0
      %v412 = vadd.f32 %v409, 1.0
      %v413 = vrcp.pop %v410
      %v414 = vmul.f32 1.0, %v413
      %v415 = vrcp.pop %v411
      %v416 = vmul.f32 1.0, %v415
      %v417 = vrcp.pop %v412
      %v418 = vmul.f32 1.0, %v417
      %420 = vset.pattern.permute.xlu0 0
      %421 = vperm.xlu0 %420, %v414
      %v422 = vpop.permute.xlu0 %421
      %425 = vset.pattern.permute.xlu0 0
      %426 = vperm.xlu0 %425, %v416
      %v427 = vpop.permute.xlu0 %426
      %430 = vset.pattern.permute.xlu0 0
      %431 = vperm.xlu0 %430, %v418
      %v432 = vpop.permute.xlu0 %431
      %v434 = vmul.f32 %v311, %v422
      %v435 = vmul.f32 %v312, %v422
      %v436 = vmul.f32 %v313, %v427
      %v437 = vmul.f32 %v314, %v427
      %v438 = vmul.f32 %v315, %v432
      %v439 = vmul.f32 %v316, %v432
      %s440 = scalar_lea.vmem %s130, 48
      %441 = vst [vmem:[%s440] sm:$0xff] %v434
      %442 = vst.msk [vmem:[%s440 + $0x8] sm:$0xff] %vm138, %v435
      %443 = vst [vmem:[%s440 + $0x10] sm:$0xff] %v436
      %444 = vst.msk [vmem:[%s440 + $0x18] sm:$0xff] %vm138, %v437
      %445 = vst [vmem:[%s440 + $0x20] sm:$0xf] %v438
      %446 = vst.msk [vmem:[%s440 + $0x28] sm:$0xf] %vm149, %v439
      %s447 = smul.u32 2, %s19
      %p448 = scmp.lt.s32.totalorder %s447, 3
      %s449 = scalar_select %p448, %s447, 3
      %s450 = smul.addr %s449, 6
      %s451 = smul.addr %s450, 8
      %s452 = scalar_lea.vmem %s2, %s451
      // Predicated region
      $region25: #{tpu_custom_call.1} parent=23 // pred_check
        %p453 = pneg %p63
      $region26: #{tpu_custom_call.1} parent=23 // pred_check_branch
        %455 = sbr.rel (%p453) target = $region28
      $region27: #{tpu_custom_call.1} parent=23 // pred_region
        %s456 = smul.u32 2, %s19
      $region28: #{tpu_custom_call.1} parent=23 // pred_fallthru
        _
    $region24: #{tpu_custom_call.1} parent=5 // pred_fallthru
      _
    %p457 = scmp.le.s32.totalorder 2, %s14
    // Predicated region
    $region29: #{tpu_custom_call.1} parent=5 // pred_check
      %p458 = pneg %p457
    $region30: #{tpu_custom_call.1} parent=5 // pred_check_branch
      %460 = sbr.rel (%p458) target = $region32
    $region31: #{tpu_custom_call.1} parent=5 // pred_region
      %s461 = ssub.s32 %s14, 2
      // Predicated region
      $region33: #{tpu_custom_call.1} parent=31 // pred_check
        %p462 = pneg %p69
      $region34: #{tpu_custom_call.1} parent=31 // pred_check_branch
        %464 = sbr.rel (%p462) target = $region36
      $region35: #{tpu_custom_call.1} parent=31 // pred_region
        %s465 = smul.u32 2, %s20
        %p466 = scmp.lt.s32.totalorder %s465, 3
        %s467 = scalar_select %p466, %s465, 3
        %s468 = smul.addr %s467, 6
        %s469 = smul.addr %s468, 8
        %s470 = scalar_lea.vmem %s2, %s469
      $region36: #{tpu_custom_call.1} parent=31 // pred_fallthru
        _
    $region32: #{tpu_custom_call.1} parent=5 // pred_fallthru
      _
  $region6: #{tpu_custom_call.1} parent=0 // loop_footer
    %s18 = sadd.s32 1, %s14
  $region7: #{tpu_custom_call.1} parent=0 // loop_footer_branch
    %13 = sbr.rel target = $region3
  $region8: #{tpu_custom_call.1} parent=0 // loop_exit
    _

</llo_original>
